<compile_context>
chip_gen: v5e
topology: v5e:2x2
jax: 0.10.0
libtpu: 0.0.40
codegen_flags: <defaults>
</compile_context>

<pallas_src>
import jax
import jax.numpy as jnp
from jax.experimental import pallas as pl
from jax.experimental.pallas import tpu as pltpu

# ---------------------------------------------------------------------------
# Static problem configuration (invconv is hard-wired to 3 channels in the
# PyTorch code, so channel_num = 3).
# ---------------------------------------------------------------------------
N, C, H, W = 2, 3, 16, 16
HW = H * W                              # 256 = 2 * 128 lanes (lane-dense)
SPLIT1 = 1                              # channel_split_num
SPLIT2 = C - SPLIT1
CLAMP = 0.8
assert W & (W - 1) == 0, "W must be a power of two for the bitwise column mask"

# Flat parameter layout (all f32 scalars, stored in SMEM inside the kernel).
OFF_IW = 0                                   # invconv combined weight (C, C)
OFF_WF = OFF_IW + C * C                      # F conv weight (SPLIT1, SPLIT2, 3, 3)
OFF_BF = OFF_WF + SPLIT1 * SPLIT2 * 9        # F bias (SPLIT1,)
OFF_WG = OFF_BF + SPLIT1                     # G conv weight (SPLIT2, SPLIT1, 3, 3)
OFF_BG = OFF_WG + SPLIT2 * SPLIT1 * 9        # G bias (SPLIT2,)
OFF_WH = OFF_BG + SPLIT2                     # H conv weight (SPLIT2, SPLIT1, 3, 3)
OFF_BH = OFF_WH + SPLIT2 * SPLIT1 * 9        # H bias (SPLIT2,)
N_PARAMS = OFF_BH + SPLIT2


# ---------------------------------------------------------------------------
# Pallas kernel: entire InvBlock forward (rev=False), whole batch resident.
# ---------------------------------------------------------------------------
def invblock_kernel(params_ref, x_ref, o_ref):
    """params_ref: SMEM f32[N_PARAMS]; x_ref/o_ref: VMEM (C, N, H*W)."""

    # Load each channel plane once -> lane-dense (N, HW) values.
    xin = [x_ref[c] for c in range(C)]

    # ---- InvertibleConv1x1: z[o] = sum_c W[o,c] * x[c] (scalar-splat FMAs) --
    z = []
    for o in range(C):
        acc = params_ref[OFF_IW + o * C] * xin[0]
        for c in range(1, C):
            acc = acc + params_ref[OFF_IW + o * C + c] * xin[c]
        z.append(acc)
    x1, x2 = z[:SPLIT1], z[SPLIT1:]

    # ---- 3x3 SAME-padding boundary masks on the flattened H*W axis ---------
    # Hoisted: computed once, reused by every shifted operand.
    p = jax.lax.broadcasted_iota(jnp.int32, (N, HW), 1)
    xx = jnp.bitwise_and(p, W - 1)      # column index (W is a power of two)

    def mask_for(dy, dx):
        conds = []
        if dy == 0:                      # needs y >= 1  <=>  p >= W
            conds.append(p >= W)
        elif dy == 2:                    # needs y <= H-2  <=>  p < (H-1)*W
            conds.append(p < (H - 1) * W)
        if dx == 0:
            conds.append(xx >= 1)
        elif dx == 2:
            conds.append(xx <= W - 2)
        if not conds:
            return None                  # center tap: always valid
        m = conds[0]
        for cnd in conds[1:]:
            m = m & cnd
        return m

    masks = [[mask_for(dy, dx) for dx in range(3)] for dy in range(3)]

    def shifted_planes(v):
        # 9 shifted operands: shifted[p] = v[p + (dy-1)*W + (dx-1)], zero
        # outside the image.  pltpu.roll runs on the XLU slot (cheap filler).
        outs = []
        for dy in range(3):
            for dx in range(3):
                off = (dy - 1) * W + (dx - 1)
                r = v if off == 0 else pltpu.roll(v, (-off) % HW, axis=1)
                m = masks[dy][dx]
                outs.append(r if m is None else jnp.where(m, r, 0.0))
        return outs

    def conv3x3(shifts, w_off, b_off, cin, cout):
        # shifts: cin lists of 9 shifted (N, HW) planes (shared over cout).
        # Accumulators start from the bias splat (no zeros + add).
        accs = [jnp.full((N, HW), params_ref[b_off + co], jnp.float32)
                for co in range(cout)]
        for ci in range(cin):
            for k in range(9):
                t = shifts[ci][k]
                for co in range(cout):
                    wv = params_ref[w_off + (co * cin + ci) * 9 + k]
                    accs[co] = accs[co] + wv * t
        return accs

    # ---- y1 = x1 + F(x2) ----------------------------------------------------
    x2_shifts = [shifted_planes(x2[i]) for i in range(SPLIT2)]
    f_out = conv3x3(x2_shifts, OFF_WF, OFF_BF, SPLIT2, SPLIT1)
    y1 = [x1[i] + f_out[i] for i in range(SPLIT1)]

    # ---- s = clamp * tanh(H(y1)/2);  y2 = x2 * exp(s) + G(y1) ---------------
    # (2*sigmoid(h) - 1 == tanh(h/2): one EUP op instead of exp + add + div.)
    y1_shifts = [shifted_planes(y1[i]) for i in range(SPLIT1)]   # shared by H & G
    h_out = conv3x3(y1_shifts, OFF_WH, OFF_BH, SPLIT1, SPLIT2)
    g_out = conv3x3(y1_shifts, OFF_WG, OFF_BG, SPLIT1, SPLIT2)

    # ---- out = cat(y1, y2) along channels (lane-dense (N, 256) stores) ------
    for i in range(SPLIT1):
        o_ref[i] = y1[i]
    for i in range(SPLIT2):
        s = CLAMP * jnp.tanh(0.5 * h_out[i])
        o_ref[SPLIT1 + i] = x2[i] * jnp.exp(s) + g_out[i]


@jax.jit
def invblock_forward(x, params):
    n, c, h, w = x.shape
    # Lane-dense layout plumbing (wrapper-side): NCHW -> (C, N, H*W).
    x_t = x.reshape(n, c, h * w).transpose(1, 0, 2)
    out_t = pl.pallas_call(
        invblock_kernel,
        out_shape=jax.ShapeDtypeStruct((c, n, h * w), jnp.float32),
        in_specs=[
            pl.BlockSpec(memory_space=pltpu.MemorySpace.SMEM),   # params
            pl.BlockSpec(memory_space=pltpu.MemorySpace.VMEM),   # whole x block
        ],
        out_specs=pl.BlockSpec(memory_space=pltpu.MemorySpace.VMEM),
    )(params, x_t)
    return out_t.transpose(1, 0, 2).reshape(n, c, h, w)


# ---------------------------------------------------------------------------
# Parameter initialization (deterministic, mirrors InvertibleConv1x1.__init__
# with LU_decomposed=True; subnets are 3x3 convs with bias).
# ---------------------------------------------------------------------------
def init_params(key):
    ks = jax.random.split(key, 7)

    w_init = jnp.linalg.qr(jax.random.normal(ks[0], (C, C), jnp.float32))[0]
    P, L, U = jax.scipy.linalg.lu(w_init)
    s = jnp.diag(U)
    sign_s = jnp.sign(s)
    log_s = jnp.log(jnp.abs(s))
    upper = jnp.triu(U, 1)
    l_mask = jnp.tril(jnp.ones((C, C), jnp.float32), -1)
    eye = jnp.eye(C, dtype=jnp.float32)
    lower = L * l_mask + eye
    u = upper * l_mask.T + jnp.diag(sign_s * jnp.exp(log_s))
    W_inv1x1 = P @ (lower @ u)

    wF = 0.1 * jax.random.normal(ks[1], (SPLIT1, SPLIT2, 3, 3), jnp.float32)
    bF = 0.1 * jax.random.normal(ks[2], (SPLIT1,), jnp.float32)
    wG = 0.1 * jax.random.normal(ks[3], (SPLIT2, SPLIT1, 3, 3), jnp.float32)
    bG = 0.1 * jax.random.normal(ks[4], (SPLIT2,), jnp.float32)
    wH = 0.1 * jax.random.normal(ks[5], (SPLIT2, SPLIT1, 3, 3), jnp.float32)
    bH = 0.1 * jax.random.normal(ks[6], (SPLIT2,), jnp.float32)

    flat = jnp.concatenate([
        W_inv1x1.reshape(-1),
        wF.reshape(-1), bF,
        wG.reshape(-1), bG,
        wH.reshape(-1), bH,
    ]).astype(jnp.float32)
    assert flat.shape[0] == N_PARAMS
    return flat, (W_inv1x1, wF, bF, wG, bG, wH, bH)


# ---------------------------------------------------------------------------
# Pure-JAX reference (for correctness check of the kernel).
# ---------------------------------------------------------------------------
def ref_forward(x, raw):
    W_inv1x1, wF, bF, wG, bG, wH, bH = raw

    def conv3(inp, w, b):
        out = jax.lax.conv_general_dilated(
            inp, w, window_strides=(1, 1), padding="SAME",
            dimension_numbers=("NCHW", "OIHW", "NCHW"))
        return out + b[None, :, None, None]

    z = jnp.einsum("oc,nchw->nohw", W_inv1x1, x)
    x1, x2 = z[:, :SPLIT1], z[:, SPLIT1:]
    y1 = x1 + conv3(x2, wF, bF)
    s = CLAMP * (jax.nn.sigmoid(conv3(y1, wH, bH)) * 2.0 - 1.0)
    y2 = x2 * jnp.exp(s) + conv3(y1, wG, bG)
    return jnp.concatenate([y1, y2], axis=1)


if __name__ == "__main__":
    key = jax.random.PRNGKey(0)
    k_x, k_p = jax.random.split(key)

    x = jax.random.normal(k_x, (N, C, H, W), jnp.float32)
    params, raw = init_params(k_p)

    out = invblock_forward(x, params)
    out = jax.block_until_ready(out)

    ref = jax.block_until_ready(ref_forward(x, raw))
    assert out.shape == (N, C, H, W)
    assert jnp.allclose(out, ref, rtol=1e-3, atol=1e-4), (
        float(jnp.max(jnp.abs(out - ref))))

    print("KERNEL_OK")
</pallas_src>

<mosaic_0001>
module attributes {stable_mosaic.version = 11 : i64} {
  func.func @invblock_kernel(%arg0: memref<68xf32, #tpu.memory_space<smem>>, %arg1: memref<3x2x256xf32, #tpu.memory_space<vmem>>, %arg2: memref<3x2x256xf32, #tpu.memory_space<vmem>>) attributes {dimension_semantics = [], scalar_prefetch = 0 : i64, scratch_operands = 0 : i64, tpu.core_type = #tpu.core_type<tc>} {
    %c0 = arith.constant 0 : index
    %c0_0 = arith.constant 0 : index
    %c0_1 = arith.constant 0 : index
    %0 = vector.load %arg1[%c0, %c0_0, %c0_1] : memref<3x2x256xf32, #tpu.memory_space<vmem>>, vector<1x2x256xf32>
    %1 = vector.shape_cast %0 : vector<1x2x256xf32> to vector<2x256xf32>
    %c1 = arith.constant 1 : index
    %c0_2 = arith.constant 0 : index
    %c0_3 = arith.constant 0 : index
    %2 = vector.load %arg1[%c1, %c0_2, %c0_3] : memref<3x2x256xf32, #tpu.memory_space<vmem>>, vector<1x2x256xf32>
    %3 = vector.shape_cast %2 : vector<1x2x256xf32> to vector<2x256xf32>
    %c2 = arith.constant 2 : index
    %c0_4 = arith.constant 0 : index
    %c0_5 = arith.constant 0 : index
    %4 = vector.load %arg1[%c2, %c0_4, %c0_5] : memref<3x2x256xf32, #tpu.memory_space<vmem>>, vector<1x2x256xf32>
    %5 = vector.shape_cast %4 : vector<1x2x256xf32> to vector<2x256xf32>
    %c0_6 = arith.constant 0 : index
    %6 = memref.load %arg0[%c0_6] : memref<68xf32, #tpu.memory_space<smem>>
    %7 = vector.broadcast %6 : f32 to vector<2x256xf32>
    %8 = arith.mulf %7, %1 : vector<2x256xf32>
    %c1_7 = arith.constant 1 : index
    %9 = memref.load %arg0[%c1_7] : memref<68xf32, #tpu.memory_space<smem>>
    %10 = vector.broadcast %9 : f32 to vector<2x256xf32>
    %11 = arith.mulf %10, %3 : vector<2x256xf32>
    %12 = arith.addf %8, %11 : vector<2x256xf32>
    %c2_8 = arith.constant 2 : index
    %13 = memref.load %arg0[%c2_8] : memref<68xf32, #tpu.memory_space<smem>>
    %14 = vector.broadcast %13 : f32 to vector<2x256xf32>
    %15 = arith.mulf %14, %5 : vector<2x256xf32>
    %16 = arith.addf %12, %15 : vector<2x256xf32>
    %c3 = arith.constant 3 : index
    %17 = memref.load %arg0[%c3] : memref<68xf32, #tpu.memory_space<smem>>
    %18 = vector.broadcast %17 : f32 to vector<2x256xf32>
    %19 = arith.mulf %18, %1 : vector<2x256xf32>
    %c4 = arith.constant 4 : index
    %20 = memref.load %arg0[%c4] : memref<68xf32, #tpu.memory_space<smem>>
    %21 = vector.broadcast %20 : f32 to vector<2x256xf32>
    %22 = arith.mulf %21, %3 : vector<2x256xf32>
    %23 = arith.addf %19, %22 : vector<2x256xf32>
    %c5 = arith.constant 5 : index
    %24 = memref.load %arg0[%c5] : memref<68xf32, #tpu.memory_space<smem>>
    %25 = vector.broadcast %24 : f32 to vector<2x256xf32>
    %26 = arith.mulf %25, %5 : vector<2x256xf32>
    %27 = arith.addf %23, %26 : vector<2x256xf32>
    %c6 = arith.constant 6 : index
    %28 = memref.load %arg0[%c6] : memref<68xf32, #tpu.memory_space<smem>>
    %29 = vector.broadcast %28 : f32 to vector<2x256xf32>
    %30 = arith.mulf %29, %1 : vector<2x256xf32>
    %c7 = arith.constant 7 : index
    %31 = memref.load %arg0[%c7] : memref<68xf32, #tpu.memory_space<smem>>
    %32 = vector.broadcast %31 : f32 to vector<2x256xf32>
    %33 = arith.mulf %32, %3 : vector<2x256xf32>
    %34 = arith.addf %30, %33 : vector<2x256xf32>
    %c8 = arith.constant 8 : index
    %35 = memref.load %arg0[%c8] : memref<68xf32, #tpu.memory_space<smem>>
    %36 = vector.broadcast %35 : f32 to vector<2x256xf32>
    %37 = arith.mulf %36, %5 : vector<2x256xf32>
    %38 = arith.addf %34, %37 : vector<2x256xf32>
    %39 = tpu.iota {dimensions = array<i32: 1>} : vector<2x256xi32>
    %c15_i32 = arith.constant 15 : i32
    %40 = vector.broadcast %c15_i32 : i32 to vector<2x256xi32>
    %41 = arith.andi %39, %40 : vector<2x256xi32>
    %c16_i32 = arith.constant 16 : i32
    %42 = vector.broadcast %c16_i32 : i32 to vector<2x256xi32>
    %43 = arith.cmpi sge, %39, %42 : vector<2x256xi32>
    %c1_i32 = arith.constant 1 : i32
    %44 = vector.broadcast %c1_i32 : i32 to vector<2x256xi32>
    %45 = arith.cmpi sge, %41, %44 : vector<2x256xi32>
    %46 = arith.andi %43, %45 : vector<2x256xi1>
    %c16_i32_9 = arith.constant 16 : i32
    %47 = vector.broadcast %c16_i32_9 : i32 to vector<2x256xi32>
    %48 = arith.cmpi sge, %39, %47 : vector<2x256xi32>
    %c16_i32_10 = arith.constant 16 : i32
    %49 = vector.broadcast %c16_i32_10 : i32 to vector<2x256xi32>
    %50 = arith.cmpi sge, %39, %49 : vector<2x256xi32>
    %c14_i32 = arith.constant 14 : i32
    %51 = vector.broadcast %c14_i32 : i32 to vector<2x256xi32>
    %52 = arith.cmpi sle, %41, %51 : vector<2x256xi32>
    %53 = arith.andi %50, %52 : vector<2x256xi1>
    %c1_i32_11 = arith.constant 1 : i32
    %54 = vector.broadcast %c1_i32_11 : i32 to vector<2x256xi32>
    %55 = arith.cmpi sge, %41, %54 : vector<2x256xi32>
    %c14_i32_12 = arith.constant 14 : i32
    %56 = vector.broadcast %c14_i32_12 : i32 to vector<2x256xi32>
    %57 = arith.cmpi sle, %41, %56 : vector<2x256xi32>
    %c240_i32 = arith.constant 240 : i32
    %58 = vector.broadcast %c240_i32 : i32 to vector<2x256xi32>
    %59 = arith.cmpi slt, %39, %58 : vector<2x256xi32>
    %c1_i32_13 = arith.constant 1 : i32
    %60 = vector.broadcast %c1_i32_13 : i32 to vector<2x256xi32>
    %61 = arith.cmpi sge, %41, %60 : vector<2x256xi32>
    %62 = arith.andi %59, %61 : vector<2x256xi1>
    %c240_i32_14 = arith.constant 240 : i32
    %63 = vector.broadcast %c240_i32_14 : i32 to vector<2x256xi32>
    %64 = arith.cmpi slt, %39, %63 : vector<2x256xi32>
    %c240_i32_15 = arith.constant 240 : i32
    %65 = vector.broadcast %c240_i32_15 : i32 to vector<2x256xi32>
    %66 = arith.cmpi slt, %39, %65 : vector<2x256xi32>
    %c14_i32_16 = arith.constant 14 : i32
    %67 = vector.broadcast %c14_i32_16 : i32 to vector<2x256xi32>
    %68 = arith.cmpi sle, %41, %67 : vector<2x256xi32>
    %69 = arith.andi %66, %68 : vector<2x256xi1>
    %c17_i32 = arith.constant 17 : i32
    %70 = tpu.dynamic_rotate %27 by %c17_i32 dim 1 : vector<2x256xf32>, i32 -> vector<2x256xf32>
    %cst = arith.constant 0.000000e+00 : f32
    %71 = vector.broadcast %cst : f32 to vector<2x256xf32>
    %72 = arith.select %46, %70, %71 : vector<2x256xi1>, vector<2x256xf32>
    %c16_i32_17 = arith.constant 16 : i32
    %73 = tpu.dynamic_rotate %27 by %c16_i32_17 dim 1 : vector<2x256xf32>, i32 -> vector<2x256xf32>
    %cst_18 = arith.constant 0.000000e+00 : f32
    %74 = vector.broadcast %cst_18 : f32 to vector<2x256xf32>
    %75 = arith.select %48, %73, %74 : vector<2x256xi1>, vector<2x256xf32>
    %c15_i32_19 = arith.constant 15 : i32
    %76 = tpu.dynamic_rotate %27 by %c15_i32_19 dim 1 : vector<2x256xf32>, i32 -> vector<2x256xf32>
    %cst_20 = arith.constant 0.000000e+00 : f32
    %77 = vector.broadcast %cst_20 : f32 to vector<2x256xf32>
    %78 = arith.select %53, %76, %77 : vector<2x256xi1>, vector<2x256xf32>
    %c1_i32_21 = arith.constant 1 : i32
    %79 = tpu.dynamic_rotate %27 by %c1_i32_21 dim 1 : vector<2x256xf32>, i32 -> vector<2x256xf32>
    %cst_22 = arith.constant 0.000000e+00 : f32
    %80 = vector.broadcast %cst_22 : f32 to vector<2x256xf32>
    %81 = arith.select %55, %79, %80 : vector<2x256xi1>, vector<2x256xf32>
    %c255_i32 = arith.constant 255 : i32
    %82 = tpu.dynamic_rotate %27 by %c255_i32 dim 1 : vector<2x256xf32>, i32 -> vector<2x256xf32>
    %cst_23 = arith.constant 0.000000e+00 : f32
    %83 = vector.broadcast %cst_23 : f32 to vector<2x256xf32>
    %84 = arith.select %57, %82, %83 : vector<2x256xi1>, vector<2x256xf32>
    %c241_i32 = arith.constant 241 : i32
    %85 = tpu.dynamic_rotate %27 by %c241_i32 dim 1 : vector<2x256xf32>, i32 -> vector<2x256xf32>
    %cst_24 = arith.constant 0.000000e+00 : f32
    %86 = vector.broadcast %cst_24 : f32 to vector<2x256xf32>
    %87 = arith.select %62, %85, %86 : vector<2x256xi1>, vector<2x256xf32>
    %c240_i32_25 = arith.constant 240 : i32
    %88 = tpu.dynamic_rotate %27 by %c240_i32_25 dim 1 : vector<2x256xf32>, i32 -> vector<2x256xf32>
    %cst_26 = arith.constant 0.000000e+00 : f32
    %89 = vector.broadcast %cst_26 : f32 to vector<2x256xf32>
    %90 = arith.select %64, %88, %89 : vector<2x256xi1>, vector<2x256xf32>
    %c239_i32 = arith.constant 239 : i32
    %91 = tpu.dynamic_rotate %27 by %c239_i32 dim 1 : vector<2x256xf32>, i32 -> vector<2x256xf32>
    %cst_27 = arith.constant 0.000000e+00 : f32
    %92 = vector.broadcast %cst_27 : f32 to vector<2x256xf32>
    %93 = arith.select %69, %91, %92 : vector<2x256xi1>, vector<2x256xf32>
    %c17_i32_28 = arith.constant 17 : i32
    %94 = tpu.dynamic_rotate %38 by %c17_i32_28 dim 1 : vector<2x256xf32>, i32 -> vector<2x256xf32>
    %cst_29 = arith.constant 0.000000e+00 : f32
    %95 = vector.broadcast %cst_29 : f32 to vector<2x256xf32>
    %96 = arith.select %46, %94, %95 : vector<2x256xi1>, vector<2x256xf32>
    %c16_i32_30 = arith.constant 16 : i32
    %97 = tpu.dynamic_rotate %38 by %c16_i32_30 dim 1 : vector<2x256xf32>, i32 -> vector<2x256xf32>
    %cst_31 = arith.constant 0.000000e+00 : f32
    %98 = vector.broadcast %cst_31 : f32 to vector<2x256xf32>
    %99 = arith.select %48, %97, %98 : vector<2x256xi1>, vector<2x256xf32>
    %c15_i32_32 = arith.constant 15 : i32
    %100 = tpu.dynamic_rotate %38 by %c15_i32_32 dim 1 : vector<2x256xf32>, i32 -> vector<2x256xf32>
    %cst_33 = arith.constant 0.000000e+00 : f32
    %101 = vector.broadcast %cst_33 : f32 to vector<2x256xf32>
    %102 = arith.select %53, %100, %101 : vector<2x256xi1>, vector<2x256xf32>
    %c1_i32_34 = arith.constant 1 : i32
    %103 = tpu.dynamic_rotate %38 by %c1_i32_34 dim 1 : vector<2x256xf32>, i32 -> vector<2x256xf32>
    %cst_35 = arith.constant 0.000000e+00 : f32
    %104 = vector.broadcast %cst_35 : f32 to vector<2x256xf32>
    %105 = arith.select %55, %103, %104 : vector<2x256xi1>, vector<2x256xf32>
    %c255_i32_36 = arith.constant 255 : i32
    %106 = tpu.dynamic_rotate %38 by %c255_i32_36 dim 1 : vector<2x256xf32>, i32 -> vector<2x256xf32>
    %cst_37 = arith.constant 0.000000e+00 : f32
    %107 = vector.broadcast %cst_37 : f32 to vector<2x256xf32>
    %108 = arith.select %57, %106, %107 : vector<2x256xi1>, vector<2x256xf32>
    %c241_i32_38 = arith.constant 241 : i32
    %109 = tpu.dynamic_rotate %38 by %c241_i32_38 dim 1 : vector<2x256xf32>, i32 -> vector<2x256xf32>
    %cst_39 = arith.constant 0.000000e+00 : f32
    %110 = vector.broadcast %cst_39 : f32 to vector<2x256xf32>
    %111 = arith.select %62, %109, %110 : vector<2x256xi1>, vector<2x256xf32>
    %c240_i32_40 = arith.constant 240 : i32
    %112 = tpu.dynamic_rotate %38 by %c240_i32_40 dim 1 : vector<2x256xf32>, i32 -> vector<2x256xf32>
    %cst_41 = arith.constant 0.000000e+00 : f32
    %113 = vector.broadcast %cst_41 : f32 to vector<2x256xf32>
    %114 = arith.select %64, %112, %113 : vector<2x256xi1>, vector<2x256xf32>
    %c239_i32_42 = arith.constant 239 : i32
    %115 = tpu.dynamic_rotate %38 by %c239_i32_42 dim 1 : vector<2x256xf32>, i32 -> vector<2x256xf32>
    %cst_43 = arith.constant 0.000000e+00 : f32
    %116 = vector.broadcast %cst_43 : f32 to vector<2x256xf32>
    %117 = arith.select %69, %115, %116 : vector<2x256xi1>, vector<2x256xf32>
    %c27 = arith.constant 27 : index
    %118 = memref.load %arg0[%c27] : memref<68xf32, #tpu.memory_space<smem>>
    %119 = vector.broadcast %118 : f32 to vector<2x256xf32>
    %c9 = arith.constant 9 : index
    %120 = memref.load %arg0[%c9] : memref<68xf32, #tpu.memory_space<smem>>
    %121 = vector.broadcast %120 : f32 to vector<2x256xf32>
    %122 = arith.mulf %121, %72 : vector<2x256xf32>
    %123 = arith.addf %119, %122 : vector<2x256xf32>
    %c10 = arith.constant 10 : index
    %124 = memref.load %arg0[%c10] : memref<68xf32, #tpu.memory_space<smem>>
    %125 = vector.broadcast %124 : f32 to vector<2x256xf32>
    %126 = arith.mulf %125, %75 : vector<2x256xf32>
    %127 = arith.addf %123, %126 : vector<2x256xf32>
    %c11 = arith.constant 11 : index
    %128 = memref.load %arg0[%c11] : memref<68xf32, #tpu.memory_space<smem>>
    %129 = vector.broadcast %128 : f32 to vector<2x256xf32>
    %130 = arith.mulf %129, %78 : vector<2x256xf32>
    %131 = arith.addf %127, %130 : vector<2x256xf32>
    %c12 = arith.constant 12 : index
    %132 = memref.load %arg0[%c12] : memref<68xf32, #tpu.memory_space<smem>>
    %133 = vector.broadcast %132 : f32 to vector<2x256xf32>
    %134 = arith.mulf %133, %81 : vector<2x256xf32>
    %135 = arith.addf %131, %134 : vector<2x256xf32>
    %c13 = arith.constant 13 : index
    %136 = memref.load %arg0[%c13] : memref<68xf32, #tpu.memory_space<smem>>
    %137 = vector.broadcast %136 : f32 to vector<2x256xf32>
    %138 = arith.mulf %137, %27 : vector<2x256xf32>
    %139 = arith.addf %135, %138 : vector<2x256xf32>
    %c14 = arith.constant 14 : index
    %140 = memref.load %arg0[%c14] : memref<68xf32, #tpu.memory_space<smem>>
    %141 = vector.broadcast %140 : f32 to vector<2x256xf32>
    %142 = arith.mulf %141, %84 : vector<2x256xf32>
    %143 = arith.addf %139, %142 : vector<2x256xf32>
    %c15 = arith.constant 15 : index
    %144 = memref.load %arg0[%c15] : memref<68xf32, #tpu.memory_space<smem>>
    %145 = vector.broadcast %144 : f32 to vector<2x256xf32>
    %146 = arith.mulf %145, %87 : vector<2x256xf32>
    %147 = arith.addf %143, %146 : vector<2x256xf32>
    %c16 = arith.constant 16 : index
    %148 = memref.load %arg0[%c16] : memref<68xf32, #tpu.memory_space<smem>>
    %149 = vector.broadcast %148 : f32 to vector<2x256xf32>
    %150 = arith.mulf %149, %90 : vector<2x256xf32>
    %151 = arith.addf %147, %150 : vector<2x256xf32>
    %c17 = arith.constant 17 : index
    %152 = memref.load %arg0[%c17] : memref<68xf32, #tpu.memory_space<smem>>
    %153 = vector.broadcast %152 : f32 to vector<2x256xf32>
    %154 = arith.mulf %153, %93 : vector<2x256xf32>
    %155 = arith.addf %151, %154 : vector<2x256xf32>
    %c18 = arith.constant 18 : index
    %156 = memref.load %arg0[%c18] : memref<68xf32, #tpu.memory_space<smem>>
    %157 = vector.broadcast %156 : f32 to vector<2x256xf32>
    %158 = arith.mulf %157, %96 : vector<2x256xf32>
    %159 = arith.addf %155, %158 : vector<2x256xf32>
    %c19 = arith.constant 19 : index
    %160 = memref.load %arg0[%c19] : memref<68xf32, #tpu.memory_space<smem>>
    %161 = vector.broadcast %160 : f32 to vector<2x256xf32>
    %162 = arith.mulf %161, %99 : vector<2x256xf32>
    %163 = arith.addf %159, %162 : vector<2x256xf32>
    %c20 = arith.constant 20 : index
    %164 = memref.load %arg0[%c20] : memref<68xf32, #tpu.memory_space<smem>>
    %165 = vector.broadcast %164 : f32 to vector<2x256xf32>
    %166 = arith.mulf %165, %102 : vector<2x256xf32>
    %167 = arith.addf %163, %166 : vector<2x256xf32>
    %c21 = arith.constant 21 : index
    %168 = memref.load %arg0[%c21] : memref<68xf32, #tpu.memory_space<smem>>
    %169 = vector.broadcast %168 : f32 to vector<2x256xf32>
    %170 = arith.mulf %169, %105 : vector<2x256xf32>
    %171 = arith.addf %167, %170 : vector<2x256xf32>
    %c22 = arith.constant 22 : index
    %172 = memref.load %arg0[%c22] : memref<68xf32, #tpu.memory_space<smem>>
    %173 = vector.broadcast %172 : f32 to vector<2x256xf32>
    %174 = arith.mulf %173, %38 : vector<2x256xf32>
    %175 = arith.addf %171, %174 : vector<2x256xf32>
    %c23 = arith.constant 23 : index
    %176 = memref.load %arg0[%c23] : memref<68xf32, #tpu.memory_space<smem>>
    %177 = vector.broadcast %176 : f32 to vector<2x256xf32>
    %178 = arith.mulf %177, %108 : vector<2x256xf32>
    %179 = arith.addf %175, %178 : vector<2x256xf32>
    %c24 = arith.constant 24 : index
    %180 = memref.load %arg0[%c24] : memref<68xf32, #tpu.memory_space<smem>>
    %181 = vector.broadcast %180 : f32 to vector<2x256xf32>
    %182 = arith.mulf %181, %111 : vector<2x256xf32>
    %183 = arith.addf %179, %182 : vector<2x256xf32>
    %c25 = arith.constant 25 : index
    %184 = memref.load %arg0[%c25] : memref<68xf32, #tpu.memory_space<smem>>
    %185 = vector.broadcast %184 : f32 to vector<2x256xf32>
    %186 = arith.mulf %185, %114 : vector<2x256xf32>
    %187 = arith.addf %183, %186 : vector<2x256xf32>
    %c26 = arith.constant 26 : index
    %188 = memref.load %arg0[%c26] : memref<68xf32, #tpu.memory_space<smem>>
    %189 = vector.broadcast %188 : f32 to vector<2x256xf32>
    %190 = arith.mulf %189, %117 : vector<2x256xf32>
    %191 = arith.addf %187, %190 : vector<2x256xf32>
    %192 = arith.addf %16, %191 : vector<2x256xf32>
    %c17_i32_44 = arith.constant 17 : i32
    %193 = tpu.dynamic_rotate %192 by %c17_i32_44 dim 1 : vector<2x256xf32>, i32 -> vector<2x256xf32>
    %cst_45 = arith.constant 0.000000e+00 : f32
    %194 = vector.broadcast %cst_45 : f32 to vector<2x256xf32>
    %195 = arith.select %46, %193, %194 : vector<2x256xi1>, vector<2x256xf32>
    %c16_i32_46 = arith.constant 16 : i32
    %196 = tpu.dynamic_rotate %192 by %c16_i32_46 dim 1 : vector<2x256xf32>, i32 -> vector<2x256xf32>
    %cst_47 = arith.constant 0.000000e+00 : f32
    %197 = vector.broadcast %cst_47 : f32 to vector<2x256xf32>
    %198 = arith.select %48, %196, %197 : vector<2x256xi1>, vector<2x256xf32>
    %c15_i32_48 = arith.constant 15 : i32
    %199 = tpu.dynamic_rotate %192 by %c15_i32_48 dim 1 : vector<2x256xf32>, i32 -> vector<2x256xf32>
    %cst_49 = arith.constant 0.000000e+00 : f32
    %200 = vector.broadcast %cst_49 : f32 to vector<2x256xf32>
    %201 = arith.select %53, %199, %200 : vector<2x256xi1>, vector<2x256xf32>
    %c1_i32_50 = arith.constant 1 : i32
    %202 = tpu.dynamic_rotate %192 by %c1_i32_50 dim 1 : vector<2x256xf32>, i32 -> vector<2x256xf32>
    %cst_51 = arith.constant 0.000000e+00 : f32
    %203 = vector.broadcast %cst_51 : f32 to vector<2x256xf32>
    %204 = arith.select %55, %202, %203 : vector<2x256xi1>, vector<2x256xf32>
    %c255_i32_52 = arith.constant 255 : i32
    %205 = tpu.dynamic_rotate %192 by %c255_i32_52 dim 1 : vector<2x256xf32>, i32 -> vector<2x256xf32>
    %cst_53 = arith.constant 0.000000e+00 : f32
    %206 = vector.broadcast %cst_53 : f32 to vector<2x256xf32>
    %207 = arith.select %57, %205, %206 : vector<2x256xi1>, vector<2x256xf32>
    %c241_i32_54 = arith.constant 241 : i32
    %208 = tpu.dynamic_rotate %192 by %c241_i32_54 dim 1 : vector<2x256xf32>, i32 -> vector<2x256xf32>
    %cst_55 = arith.constant 0.000000e+00 : f32
    %209 = vector.broadcast %cst_55 : f32 to vector<2x256xf32>
    %210 = arith.select %62, %208, %209 : vector<2x256xi1>, vector<2x256xf32>
    %c240_i32_56 = arith.constant 240 : i32
    %211 = tpu.dynamic_rotate %192 by %c240_i32_56 dim 1 : vector<2x256xf32>, i32 -> vector<2x256xf32>
    %cst_57 = arith.constant 0.000000e+00 : f32
    %212 = vector.broadcast %cst_57 : f32 to vector<2x256xf32>
    %213 = arith.select %64, %211, %212 : vector<2x256xi1>, vector<2x256xf32>
    %c239_i32_58 = arith.constant 239 : i32
    %214 = tpu.dynamic_rotate %192 by %c239_i32_58 dim 1 : vector<2x256xf32>, i32 -> vector<2x256xf32>
    %cst_59 = arith.constant 0.000000e+00 : f32
    %215 = vector.broadcast %cst_59 : f32 to vector<2x256xf32>
    %216 = arith.select %69, %214, %215 : vector<2x256xi1>, vector<2x256xf32>
    %c66 = arith.constant 66 : index
    %217 = memref.load %arg0[%c66] : memref<68xf32, #tpu.memory_space<smem>>
    %218 = vector.broadcast %217 : f32 to vector<2x256xf32>
    %c67 = arith.constant 67 : index
    %219 = memref.load %arg0[%c67] : memref<68xf32, #tpu.memory_space<smem>>
    %220 = vector.broadcast %219 : f32 to vector<2x256xf32>
    %c48 = arith.constant 48 : index
    %221 = memref.load %arg0[%c48] : memref<68xf32, #tpu.memory_space<smem>>
    %222 = vector.broadcast %221 : f32 to vector<2x256xf32>
    %223 = arith.mulf %222, %195 : vector<2x256xf32>
    %224 = arith.addf %218, %223 : vector<2x256xf32>
    %c57 = arith.constant 57 : index
    %225 = memref.load %arg0[%c57] : memref<68xf32, #tpu.memory_space<smem>>
    %226 = vector.broadcast %225 : f32 to vector<2x256xf32>
    %227 = arith.mulf %226, %195 : vector<2x256xf32>
    %228 = arith.addf %220, %227 : vector<2x256xf32>
    %c49 = arith.constant 49 : index
    %229 = memref.load %arg0[%c49] : memref<68xf32, #tpu.memory_space<smem>>
    %230 = vector.broadcast %229 : f32 to vector<2x256xf32>
    %231 = arith.mulf %230, %198 : vector<2x256xf32>
    %232 = arith.addf %224, %231 : vector<2x256xf32>
    %c58 = arith.constant 58 : index
    %233 = memref.load %arg0[%c58] : memref<68xf32, #tpu.memory_space<smem>>
    %234 = vector.broadcast %233 : f32 to vector<2x256xf32>
    %235 = arith.mulf %234, %198 : vector<2x256xf32>
    %236 = arith.addf %228, %235 : vector<2x256xf32>
    %c50 = arith.constant 50 : index
    %237 = memref.load %arg0[%c50] : memref<68xf32, #tpu.memory_space<smem>>
    %238 = vector.broadcast %237 : f32 to vector<2x256xf32>
    %239 = arith.mulf %238, %201 : vector<2x256xf32>
    %240 = arith.addf %232, %239 : vector<2x256xf32>
    %c59 = arith.constant 59 : index
    %241 = memref.load %arg0[%c59] : memref<68xf32, #tpu.memory_space<smem>>
    %242 = vector.broadcast %241 : f32 to vector<2x256xf32>
    %243 = arith.mulf %242, %201 : vector<2x256xf32>
    %244 = arith.addf %236, %243 : vector<2x256xf32>
    %c51 = arith.constant 51 : index
    %245 = memref.load %arg0[%c51] : memref<68xf32, #tpu.memory_space<smem>>
    %246 = vector.broadcast %245 : f32 to vector<2x256xf32>
    %247 = arith.mulf %246, %204 : vector<2x256xf32>
    %248 = arith.addf %240, %247 : vector<2x256xf32>
    %c60 = arith.constant 60 : index
    %249 = memref.load %arg0[%c60] : memref<68xf32, #tpu.memory_space<smem>>
    %250 = vector.broadcast %249 : f32 to vector<2x256xf32>
    %251 = arith.mulf %250, %204 : vector<2x256xf32>
    %252 = arith.addf %244, %251 : vector<2x256xf32>
    %c52 = arith.constant 52 : index
    %253 = memref.load %arg0[%c52] : memref<68xf32, #tpu.memory_space<smem>>
    %254 = vector.broadcast %253 : f32 to vector<2x256xf32>
    %255 = arith.mulf %254, %192 : vector<2x256xf32>
    %256 = arith.addf %248, %255 : vector<2x256xf32>
    %c61 = arith.constant 61 : index
    %257 = memref.load %arg0[%c61] : memref<68xf32, #tpu.memory_space<smem>>
    %258 = vector.broadcast %257 : f32 to vector<2x256xf32>
    %259 = arith.mulf %258, %192 : vector<2x256xf32>
    %260 = arith.addf %252, %259 : vector<2x256xf32>
    %c53 = arith.constant 53 : index
    %261 = memref.load %arg0[%c53] : memref<68xf32, #tpu.memory_space<smem>>
    %262 = vector.broadcast %261 : f32 to vector<2x256xf32>
    %263 = arith.mulf %262, %207 : vector<2x256xf32>
    %264 = arith.addf %256, %263 : vector<2x256xf32>
    %c62 = arith.constant 62 : index
    %265 = memref.load %arg0[%c62] : memref<68xf32, #tpu.memory_space<smem>>
    %266 = vector.broadcast %265 : f32 to vector<2x256xf32>
    %267 = arith.mulf %266, %207 : vector<2x256xf32>
    %268 = arith.addf %260, %267 : vector<2x256xf32>
    %c54 = arith.constant 54 : index
    %269 = memref.load %arg0[%c54] : memref<68xf32, #tpu.memory_space<smem>>
    %270 = vector.broadcast %269 : f32 to vector<2x256xf32>
    %271 = arith.mulf %270, %210 : vector<2x256xf32>
    %272 = arith.addf %264, %271 : vector<2x256xf32>
    %c63 = arith.constant 63 : index
    %273 = memref.load %arg0[%c63] : memref<68xf32, #tpu.memory_space<smem>>
    %274 = vector.broadcast %273 : f32 to vector<2x256xf32>
    %275 = arith.mulf %274, %210 : vector<2x256xf32>
    %276 = arith.addf %268, %275 : vector<2x256xf32>
    %c55 = arith.constant 55 : index
    %277 = memref.load %arg0[%c55] : memref<68xf32, #tpu.memory_space<smem>>
    %278 = vector.broadcast %277 : f32 to vector<2x256xf32>
    %279 = arith.mulf %278, %213 : vector<2x256xf32>
    %280 = arith.addf %272, %279 : vector<2x256xf32>
    %c64 = arith.constant 64 : index
    %281 = memref.load %arg0[%c64] : memref<68xf32, #tpu.memory_space<smem>>
    %282 = vector.broadcast %281 : f32 to vector<2x256xf32>
    %283 = arith.mulf %282, %213 : vector<2x256xf32>
    %284 = arith.addf %276, %283 : vector<2x256xf32>
    %c56 = arith.constant 56 : index
    %285 = memref.load %arg0[%c56] : memref<68xf32, #tpu.memory_space<smem>>
    %286 = vector.broadcast %285 : f32 to vector<2x256xf32>
    %287 = arith.mulf %286, %216 : vector<2x256xf32>
    %288 = arith.addf %280, %287 : vector<2x256xf32>
    %c65 = arith.constant 65 : index
    %289 = memref.load %arg0[%c65] : memref<68xf32, #tpu.memory_space<smem>>
    %290 = vector.broadcast %289 : f32 to vector<2x256xf32>
    %291 = arith.mulf %290, %216 : vector<2x256xf32>
    %292 = arith.addf %284, %291 : vector<2x256xf32>
    %c46 = arith.constant 46 : index
    %293 = memref.load %arg0[%c46] : memref<68xf32, #tpu.memory_space<smem>>
    %294 = vector.broadcast %293 : f32 to vector<2x256xf32>
    %c47 = arith.constant 47 : index
    %295 = memref.load %arg0[%c47] : memref<68xf32, #tpu.memory_space<smem>>
    %296 = vector.broadcast %295 : f32 to vector<2x256xf32>
    %c28 = arith.constant 28 : index
    %297 = memref.load %arg0[%c28] : memref<68xf32, #tpu.memory_space<smem>>
    %298 = vector.broadcast %297 : f32 to vector<2x256xf32>
    %299 = arith.mulf %298, %195 : vector<2x256xf32>
    %300 = arith.addf %294, %299 : vector<2x256xf32>
    %c37 = arith.constant 37 : index
    %301 = memref.load %arg0[%c37] : memref<68xf32, #tpu.memory_space<smem>>
    %302 = vector.broadcast %301 : f32 to vector<2x256xf32>
    %303 = arith.mulf %302, %195 : vector<2x256xf32>
    %304 = arith.addf %296, %303 : vector<2x256xf32>
    %c29 = arith.constant 29 : index
    %305 = memref.load %arg0[%c29] : memref<68xf32, #tpu.memory_space<smem>>
    %306 = vector.broadcast %305 : f32 to vector<2x256xf32>
    %307 = arith.mulf %306, %198 : vector<2x256xf32>
    %308 = arith.addf %300, %307 : vector<2x256xf32>
    %c38 = arith.constant 38 : index
    %309 = memref.load %arg0[%c38] : memref<68xf32, #tpu.memory_space<smem>>
    %310 = vector.broadcast %309 : f32 to vector<2x256xf32>
    %311 = arith.mulf %310, %198 : vector<2x256xf32>
    %312 = arith.addf %304, %311 : vector<2x256xf32>
    %c30 = arith.constant 30 : index
    %313 = memref.load %arg0[%c30] : memref<68xf32, #tpu.memory_space<smem>>
    %314 = vector.broadcast %313 : f32 to vector<2x256xf32>
    %315 = arith.mulf %314, %201 : vector<2x256xf32>
    %316 = arith.addf %308, %315 : vector<2x256xf32>
    %c39 = arith.constant 39 : index
    %317 = memref.load %arg0[%c39] : memref<68xf32, #tpu.memory_space<smem>>
    %318 = vector.broadcast %317 : f32 to vector<2x256xf32>
    %319 = arith.mulf %318, %201 : vector<2x256xf32>
    %320 = arith.addf %312, %319 : vector<2x256xf32>
    %c31 = arith.constant 31 : index
    %321 = memref.load %arg0[%c31] : memref<68xf32, #tpu.memory_space<smem>>
    %322 = vector.broadcast %321 : f32 to vector<2x256xf32>
    %323 = arith.mulf %322, %204 : vector<2x256xf32>
    %324 = arith.addf %316, %323 : vector<2x256xf32>
    %c40 = arith.constant 40 : index
    %325 = memref.load %arg0[%c40] : memref<68xf32, #tpu.memory_space<smem>>
    %326 = vector.broadcast %325 : f32 to vector<2x256xf32>
    %327 = arith.mulf %326, %204 : vector<2x256xf32>
    %328 = arith.addf %320, %327 : vector<2x256xf32>
    %c32 = arith.constant 32 : index
    %329 = memref.load %arg0[%c32] : memref<68xf32, #tpu.memory_space<smem>>
    %330 = vector.broadcast %329 : f32 to vector<2x256xf32>
    %331 = arith.mulf %330, %192 : vector<2x256xf32>
    %332 = arith.addf %324, %331 : vector<2x256xf32>
    %c41 = arith.constant 41 : index
    %333 = memref.load %arg0[%c41] : memref<68xf32, #tpu.memory_space<smem>>
    %334 = vector.broadcast %333 : f32 to vector<2x256xf32>
    %335 = arith.mulf %334, %192 : vector<2x256xf32>
    %336 = arith.addf %328, %335 : vector<2x256xf32>
    %c33 = arith.constant 33 : index
    %337 = memref.load %arg0[%c33] : memref<68xf32, #tpu.memory_space<smem>>
    %338 = vector.broadcast %337 : f32 to vector<2x256xf32>
    %339 = arith.mulf %338, %207 : vector<2x256xf32>
    %340 = arith.addf %332, %339 : vector<2x256xf32>
    %c42 = arith.constant 42 : index
    %341 = memref.load %arg0[%c42] : memref<68xf32, #tpu.memory_space<smem>>
    %342 = vector.broadcast %341 : f32 to vector<2x256xf32>
    %343 = arith.mulf %342, %207 : vector<2x256xf32>
    %344 = arith.addf %336, %343 : vector<2x256xf32>
    %c34 = arith.constant 34 : index
    %345 = memref.load %arg0[%c34] : memref<68xf32, #tpu.memory_space<smem>>
    %346 = vector.broadcast %345 : f32 to vector<2x256xf32>
    %347 = arith.mulf %346, %210 : vector<2x256xf32>
    %348 = arith.addf %340, %347 : vector<2x256xf32>
    %c43 = arith.constant 43 : index
    %349 = memref.load %arg0[%c43] : memref<68xf32, #tpu.memory_space<smem>>
    %350 = vector.broadcast %349 : f32 to vector<2x256xf32>
    %351 = arith.mulf %350, %210 : vector<2x256xf32>
    %352 = arith.addf %344, %351 : vector<2x256xf32>
    %c35 = arith.constant 35 : index
    %353 = memref.load %arg0[%c35] : memref<68xf32, #tpu.memory_space<smem>>
    %354 = vector.broadcast %353 : f32 to vector<2x256xf32>
    %355 = arith.mulf %354, %213 : vector<2x256xf32>
    %356 = arith.addf %348, %355 : vector<2x256xf32>
    %c44 = arith.constant 44 : index
    %357 = memref.load %arg0[%c44] : memref<68xf32, #tpu.memory_space<smem>>
    %358 = vector.broadcast %357 : f32 to vector<2x256xf32>
    %359 = arith.mulf %358, %213 : vector<2x256xf32>
    %360 = arith.addf %352, %359 : vector<2x256xf32>
    %c36 = arith.constant 36 : index
    %361 = memref.load %arg0[%c36] : memref<68xf32, #tpu.memory_space<smem>>
    %362 = vector.broadcast %361 : f32 to vector<2x256xf32>
    %363 = arith.mulf %362, %216 : vector<2x256xf32>
    %364 = arith.addf %356, %363 : vector<2x256xf32>
    %c45 = arith.constant 45 : index
    %365 = memref.load %arg0[%c45] : memref<68xf32, #tpu.memory_space<smem>>
    %366 = vector.broadcast %365 : f32 to vector<2x256xf32>
    %367 = arith.mulf %366, %216 : vector<2x256xf32>
    %368 = arith.addf %360, %367 : vector<2x256xf32>
    %c0_60 = arith.constant 0 : index
    %c0_61 = arith.constant 0 : index
    %c0_62 = arith.constant 0 : index
    %369 = vector.load %arg2[%c0_60, %c0_61, %c0_62] : memref<3x2x256xf32, #tpu.memory_space<vmem>>, vector<1x2x256xf32>
    %370 = vector.shape_cast %369 : vector<1x2x256xf32> to vector<2x256xf32>
    %371 = vector.shape_cast %192 : vector<2x256xf32> to vector<1x2x256xf32>
    tpu.vector_store %arg2[%c0_60, %c0_61, %c0_62], %371 {strides = array<i32>} : memref<3x2x256xf32, #tpu.memory_space<vmem>>, vector<1x2x256xf32>,
    %cst_63 = arith.constant 5.000000e-01 : f32
    %372 = vector.broadcast %cst_63 : f32 to vector<2x256xf32>
    %373 = arith.mulf %372, %288 : vector<2x256xf32>
    %374 = math.tanh %373 : vector<2x256xf32>
    %cst_64 = arith.constant 8.000000e-01 : f32
    %375 = vector.broadcast %cst_64 : f32 to vector<2x256xf32>
    %376 = arith.mulf %375, %374 : vector<2x256xf32>
    %377 = math.exp %376 : vector<2x256xf32>
    %378 = arith.mulf %27, %377 : vector<2x256xf32>
    %379 = arith.addf %378, %364 : vector<2x256xf32>
    %c1_65 = arith.constant 1 : index
    %c0_66 = arith.constant 0 : index
    %c0_67 = arith.constant 0 : index
    %380 = vector.load %arg2[%c1_65, %c0_66, %c0_67] : memref<3x2x256xf32, #tpu.memory_space<vmem>>, vector<1x2x256xf32>
    %381 = vector.shape_cast %380 : vector<1x2x256xf32> to vector<2x256xf32>
    %382 = vector.shape_cast %379 : vector<2x256xf32> to vector<1x2x256xf32>
    tpu.vector_store %arg2[%c1_65, %c0_66, %c0_67], %382 {strides = array<i32>} : memref<3x2x256xf32, #tpu.memory_space<vmem>>, vector<1x2x256xf32>,
    %cst_68 = arith.constant 5.000000e-01 : f32
    %383 = vector.broadcast %cst_68 : f32 to vector<2x256xf32>
    %384 = arith.mulf %383, %292 : vector<2x256xf32>
    %385 = math.tanh %384 : vector<2x256xf32>
    %cst_69 = arith.constant 8.000000e-01 : f32
    %386 = vector.broadcast %cst_69 : f32 to vector<2x256xf32>
    %387 = arith.mulf %386, %385 : vector<2x256xf32>
    %388 = math.exp %387 : vector<2x256xf32>
    %389 = arith.mulf %38, %388 : vector<2x256xf32>
    %390 = arith.addf %389, %368 : vector<2x256xf32>
    %c2_70 = arith.constant 2 : index
    %c0_71 = arith.constant 0 : index
    %c0_72 = arith.constant 0 : index
    %391 = vector.load %arg2[%c2_70, %c0_71, %c0_72] : memref<3x2x256xf32, #tpu.memory_space<vmem>>, vector<1x2x256xf32>
    %392 = vector.shape_cast %391 : vector<1x2x256xf32> to vector<2x256xf32>
    %393 = vector.shape_cast %390 : vector<2x256xf32> to vector<1x2x256xf32>
    tpu.vector_store %arg2[%c2_70, %c0_71, %c0_72], %393 {strides = array<i32>} : memref<3x2x256xf32, #tpu.memory_space<vmem>>, vector<1x2x256xf32>,
    return
  }
}

</mosaic_0001>

<llo_original>
// kernel: invblock_forward.1
$region0: #{invblock_forward.1}
  #allocation0 [shape = 'u32[]', space=smem, size = 0x4, offset = 0x4, fixed_abs, tag = 'smem constant byte address 0x4 - core index']
  #allocation1 [shape = 'u32[72,128]{1,0:T(1,128)}', space=vmem, size = 0x9000, scoped, tag = 'internal scratch']
  %s0 = inlined_call_operand.vmem [shape: f32[68], index: 0, kind: input, shape index: {}]
  %s1 = inlined_call_operand.vmem [shape: f32[3,2,256], index: 1, kind: input, shape index: {}]
  %s2 = inlined_call_operand.vmem [shape: f32[3,2,256], index: 2, kind: output, shape index: {}]
  %s3 = sld [smem:[#allocation0]]
  $region22: #{invblock_forward.1} parent=0
    _
  %s5 = ssub.s32 1, %s3
  %s6 = scalar_select 0, %s5, %s3
  $region1: #{invblock_forward.1} parent=0
    #allocation2 [shape = 'u8[512]{0}', space=smem, size = 0x200, scoped, tag = 'input window, operand 0, single buffered']
    #allocation3 [shape = 's32[1]{0}', space=sflag, size = 0x4, scoped, tag = 'scoped memory for invblock_forward.1']
    %7 = vsyncpa [#allocation3], 0
    // Predicated region
    $region2: #{invblock_forward.1} parent=1 // pred_check
      _
    $region3: #{invblock_forward.1} parent=1 // pred_check_branch
      %9 = sbr.rel (0) target = $region5
    $region4: #{invblock_forward.1} parent=1 // pred_region
      %11 = vsyncadd [#allocation3], 0
      %s13 = sshll.u32 %s0, 4
      %s14 = int_to_ptr.vmem [resolvable:$true] %s13
      %16 = dma.vmem_to_smem %s14, 16, [#allocation2], [#allocation3]
    $region5: #{invblock_forward.1} parent=1 // pred_fallthru
      _
    // Predicated region
    $region6: #{invblock_forward.1} parent=1 // pred_check
      _
    $region7: #{invblock_forward.1} parent=1 // pred_check_branch
      %18 = sbr.rel (0) target = $region9
    $region8: #{invblock_forward.1} parent=1 // pred_region
      _
    $region9: #{invblock_forward.1} parent=1 // pred_fallthru
      _
    // Predicated region
    $region10: #{invblock_forward.1} parent=1 // pred_check
      _
    $region11: #{invblock_forward.1} parent=1 // pred_check_branch
      %20 = sbr.rel (0) target = $region13
    $region12: #{invblock_forward.1} parent=1 // pred_region
      %22 = dma.done [#allocation3], 16
    $region13: #{invblock_forward.1} parent=1 // pred_fallthru
      _
    %23 = sfence
    %v24 = vld [vmem:[%s1] sm:$0xf]
    %s25 = scalar_lea.vmem %s1, 4
    %v26 = vld [vmem:[%s25] sm:$0xf]
    %s27 = scalar_lea.vmem %s1, 8
    %v28 = vld [vmem:[%s27] sm:$0xf]
    %s29 = sld [smem:[#allocation2]]
    %v30 = vstv %s29
    %v31 = vmul.f32 %v30, %v24
    %s32 = sld [smem:[#allocation2 + $0x1]]
    %v33 = vstv %s32
    %v34 = vmul.f32 %v33, %v26
    %v35 = vadd.f32 %v31, %v34
    %s36 = sld [smem:[#allocation2 + $0x2]]
    %v37 = vstv %s36
    %v38 = vmul.f32 %v37, %v28
    %v39 = vadd.f32 %v35, %v38
    %s40 = sld [smem:[#allocation2 + $0x3]]
    %v41 = vstv %s40
    %v42 = vmul.f32 %v41, %v24
    %s43 = sld [smem:[#allocation2 + $0x4]]
    %v44 = vstv %s43
    %v45 = vmul.f32 %v44, %v26
    %v46 = vadd.f32 %v42, %v45
    %s47 = sld [smem:[#allocation2 + $0x5]]
    %v48 = vstv %s47
    %v49 = vmul.f32 %v48, %v28
    %v50 = vadd.f32 %v46, %v49
    %s51 = sld [smem:[#allocation2 + $0x6]]
    %v52 = vstv %s51
    %v53 = vmul.f32 %v52, %v24
    %s54 = sld [smem:[#allocation2 + $0x7]]
    %v55 = vstv %s54
    %v56 = vmul.f32 %v55, %v26
    %v57 = vadd.f32 %v53, %v56
    %s58 = sld [smem:[#allocation2 + $0x8]]
    %v59 = vstv %s58
    %v60 = vmul.f32 %v59, %v28
    %v61 = vadd.f32 %v57, %v60
    %v62 = vlaneseq
    %v63 = vand.u32 %v62, 127
    %v64 = vadd.s32 %v63, 128
    %v65 = vand.u32 %v63, 15
    %v66 = vand.u32 %v64, 15
    %vm67 = vcmp.ge.s32.totalorder %v63, 16
    %vm68 = vcmp.ge.s32.totalorder %v64, 16
    %vm69 = vcmp.ge.s32.totalorder %v65, 1
    %vm70 = vcmp.ge.s32.totalorder %v66, 1
    %vm71 = vmand %vm67, %vm69
    %vm72 = vmand %vm68, %vm70
    %vm73 = vcmp.le.s32.totalorder %v65, 14
    %vm74 = vcmp.le.s32.totalorder %v66, 14
    %vm75 = vmand %vm67, %vm73
    %vm76 = vmand %vm68, %vm74
    %vm77 = vcmp.lt.s32.totalorder %v63, 240
    %vm78 = vcmp.lt.s32.totalorder %v64, 240
    %vm79 = vmand %vm77, %vm69
    %vm80 = vmand %vm78, %vm70
    %vm81 = vmand %vm77, %vm73
    %vm82 = vmand %vm78, %vm74
    %84 = vst [vmem:[#allocation1] ss:$4 sm:$0xff] %v50
    %v85 = vld.sshfl [vmem:[#allocation1] sm:$0xff pattern:$0x73625140]
    %v86 = vld.sshfl [vmem:[#allocation1 + $0x8] sm:$0xff pattern:$0x73625140]
    %89 = vrot.lane.b32.xlu0 %v85, 17
    %v90 = vpop.permute.xlu0 %89
    %91 = vrot.lane.b32.xlu0 %v86, 17
    %v92 = vpop.permute.xlu0 %91
    %vm93 = vcmp.lt.s32.totalorder %v63, 17
    %v94 = vsel %vm93, %v90, %v92
    %v95 = vsel %vm93, %v92, %v90
    %v96 = vsel %vm71, %v95, 0.0
    %v97 = vsel %vm72, %v94, 0.0
    %98 = vst [vmem:[#allocation1] ss:$4 sm:$0xff] %v50
    %v99 = vld.sshfl [vmem:[#allocation1] sm:$0xff pattern:$0x73625140]
    %v100 = vld.sshfl [vmem:[#allocation1 + $0x8] sm:$0xff pattern:$0x73625140]
    %103 = vrot.lane.b32.xlu0 %v99, 16
    %v104 = vpop.permute.xlu0 %103
    %105 = vrot.lane.b32.xlu0 %v100, 16
    %v106 = vpop.permute.xlu0 %105
    %vm107 = vcmp.lt.s32.totalorder %v63, 16
    %v108 = vsel %vm107, %v104, %v106
    %v109 = vsel %vm107, %v106, %v104
    %v110 = vsel %vm67, %v109, 0.0
    %v111 = vsel %vm68, %v108, 0.0
    %112 = vst [vmem:[#allocation1] ss:$4 sm:$0xff] %v50
    %v113 = vld.sshfl [vmem:[#allocation1] sm:$0xff pattern:$0x73625140]
    %v114 = vld.sshfl [vmem:[#allocation1 + $0x8] sm:$0xff pattern:$0x73625140]
    %117 = vrot.lane.b32.xlu0 %v113, 15
    %v118 = vpop.permute.xlu0 %117
    %119 = vrot.lane.b32.xlu0 %v114, 15
    %v120 = vpop.permute.xlu0 %119
    %vm121 = vcmp.lt.s32.totalorder %v63, 15
    %v122 = vsel %vm121, %v118, %v120
    %v123 = vsel %vm121, %v120, %v118
    %v124 = vsel %vm75, %v123, 0.0
    %v125 = vsel %vm76, %v122, 0.0
    %126 = vst [vmem:[#allocation1] ss:$4 sm:$0xff] %v50
    %v127 = vld.sshfl [vmem:[#allocation1] sm:$0xff pattern:$0x73625140]
    %v128 = vld.sshfl [vmem:[#allocation1 + $0x8] sm:$0xff pattern:$0x73625140]
    %131 = vrot.lane.b32.xlu0 %v127, 1
    %v132 = vpop.permute.xlu0 %131
    %133 = vrot.lane.b32.xlu0 %v128, 1
    %v134 = vpop.permute.xlu0 %133
    %vm135 = vcmp.lt.s32.totalorder %v63, 1
    %v136 = vsel %vm135, %v132, %v134
    %v137 = vsel %vm135, %v134, %v132
    %v138 = vsel %vm69, %v137, 0.0
    %v139 = vsel %vm70, %v136, 0.0
    %140 = vst [vmem:[#allocation1] ss:$4 sm:$0xff] %v50
    %v141 = vld.sshfl [vmem:[#allocation1] sm:$0xff pattern:$0x73625140]
    %v142 = vld.sshfl [vmem:[#allocation1 + $0x8] sm:$0xff pattern:$0x73625140]
    %145 = vrot.lane.b32.xlu0 %v141, 127
    %v146 = vpop.permute.xlu0 %145
    %147 = vrot.lane.b32.xlu0 %v142, 127
    %v148 = vpop.permute.xlu0 %147
    %vm149 = vcmp.lt.s32.totalorder %v63, 127
    %v150 = vsel %vm149, %v146, %v148
    %v151 = vsel %vm149, %v148, %v146
    %v152 = vsel %vm73, %v150, 0.0
    %v153 = vsel %vm74, %v151, 0.0
    %154 = vst [vmem:[#allocation1] ss:$4 sm:$0xff] %v50
    %v155 = vld.sshfl [vmem:[#allocation1] sm:$0xff pattern:$0x73625140]
    %v156 = vld.sshfl [vmem:[#allocation1 + $0x8] sm:$0xff pattern:$0x73625140]
    %159 = vrot.lane.b32.xlu0 %v155, 113
    %v160 = vpop.permute.xlu0 %159
    %161 = vrot.lane.b32.xlu0 %v156, 113
    %v162 = vpop.permute.xlu0 %161
    %vm163 = vcmp.lt.s32.totalorder %v63, 113
    %v164 = vsel %vm163, %v160, %v162
    %v165 = vsel %vm163, %v162, %v160
    %v166 = vsel %vm79, %v164, 0.0
    %v167 = vsel %vm80, %v165, 0.0
    %168 = vst [vmem:[#allocation1] ss:$4 sm:$0xff] %v50
    %v169 = vld.sshfl [vmem:[#allocation1] sm:$0xff pattern:$0x73625140]
    %v170 = vld.sshfl [vmem:[#allocation1 + $0x8] sm:$0xff pattern:$0x73625140]
    %173 = vrot.lane.b32.xlu0 %v169, 112
    %v174 = vpop.permute.xlu0 %173
    %175 = vrot.lane.b32.xlu0 %v170, 112
    %v176 = vpop.permute.xlu0 %175
    %vm177 = vcmp.lt.s32.totalorder %v63, 112
    %v178 = vsel %vm177, %v174, %v176
    %v179 = vsel %vm177, %v176, %v174
    %v180 = vsel %vm77, %v178, 0.0
    %v181 = vsel %vm78, %v179, 0.0
    %182 = vst [vmem:[#allocation1] ss:$4 sm:$0xff] %v50
    %v183 = vld.sshfl [vmem:[#allocation1] sm:$0xff pattern:$0x73625140]
    %v184 = vld.sshfl [vmem:[#allocation1 + $0x8] sm:$0xff pattern:$0x73625140]
    %187 = vrot.lane.b32.xlu0 %v183, 111
    %v188 = vpop.permute.xlu0 %187
    %189 = vrot.lane.b32.xlu0 %v184, 111
    %v190 = vpop.permute.xlu0 %189
    %vm191 = vcmp.lt.s32.totalorder %v63, 111
    %v192 = vsel %vm191, %v188, %v190
    %v193 = vsel %vm191, %v190, %v188
    %v194 = vsel %vm81, %v192, 0.0
    %v195 = vsel %vm82, %v193, 0.0
    %197 = vst [vmem:[#allocation1] ss:$4 sm:$0xff] %v61
    %v198 = vld.sshfl [vmem:[#allocation1] sm:$0xff pattern:$0x73625140]
    %v199 = vld.sshfl [vmem:[#allocation1 + $0x8] sm:$0xff pattern:$0x73625140]
    %202 = vrot.lane.b32.xlu0 %v198, 17
    %v203 = vpop.permute.xlu0 %202
    %204 = vrot.lane.b32.xlu0 %v199, 17
    %v205 = vpop.permute.xlu0 %204
    %v206 = vsel %vm93, %v203, %v205
    %v207 = vsel %vm93, %v205, %v203
    %v208 = vsel %vm71, %v207, 0.0
    %v209 = vsel %vm72, %v206, 0.0
    %210 = vst [vmem:[#allocation1] ss:$4 sm:$0xff] %v61
    %v211 = vld.sshfl [vmem:[#allocation1] sm:$0xff pattern:$0x73625140]
    %v212 = vld.sshfl [vmem:[#allocation1 + $0x8] sm:$0xff pattern:$0x73625140]
    %215 = vrot.lane.b32.xlu0 %v211, 16
    %v216 = vpop.permute.xlu0 %215
    %217 = vrot.lane.b32.xlu0 %v212, 16
    %v218 = vpop.permute.xlu0 %217
    %v219 = vsel %vm107, %v216, %v218
    %v220 = vsel %vm107, %v218, %v216
    %v221 = vsel %vm67, %v220, 0.0
    %v222 = vsel %vm68, %v219, 0.0
    %223 = vst [vmem:[#allocation1] ss:$4 sm:$0xff] %v61
    %v224 = vld.sshfl [vmem:[#allocation1] sm:$0xff pattern:$0x73625140]
    %v225 = vld.sshfl [vmem:[#allocation1 + $0x8] sm:$0xff pattern:$0x73625140]
    %228 = vrot.lane.b32.xlu0 %v224, 15
    %v229 = vpop.permute.xlu0 %228
    %230 = vrot.lane.b32.xlu0 %v225, 15
    %v231 = vpop.permute.xlu0 %230
    %v232 = vsel %vm121, %v229, %v231
    %v233 = vsel %vm121, %v231, %v229
    %v234 = vsel %vm75, %v233, 0.0
    %v235 = vsel %vm76, %v232, 0.0
    %236 = vst [vmem:[#allocation1] ss:$4 sm:$0xff] %v61
    %v237 = vld.sshfl [vmem:[#allocation1] sm:$0xff pattern:$0x73625140]
    %v238 = vld.sshfl [vmem:[#allocation1 + $0x8] sm:$0xff pattern:$0x73625140]
    %241 = vrot.lane.b32.xlu0 %v237, 1
    %v242 = vpop.permute.xlu0 %241
    %243 = vrot.lane.b32.xlu0 %v238, 1
    %v244 = vpop.permute.xlu0 %243
    %v245 = vsel %vm135, %v242, %v244
    %v246 = vsel %vm135, %v244, %v242
    %v247 = vsel %vm69, %v246, 0.0
    %v248 = vsel %vm70, %v245, 0.0
    %249 = vst [vmem:[#allocation1] ss:$4 sm:$0xff] %v61
    %v250 = vld.sshfl [vmem:[#allocation1] sm:$0xff pattern:$0x73625140]
    %v251 = vld.sshfl [vmem:[#allocation1 + $0x8] sm:$0xff pattern:$0x73625140]
    %254 = vrot.lane.b32.xlu0 %v250, 127
    %v255 = vpop.permute.xlu0 %254
    %256 = vrot.lane.b32.xlu0 %v251, 127
    %v257 = vpop.permute.xlu0 %256
    %v258 = vsel %vm149, %v255, %v257
    %v259 = vsel %vm149, %v257, %v255
    %v260 = vsel %vm73, %v258, 0.0
    %v261 = vsel %vm74, %v259, 0.0
    %262 = vst [vmem:[#allocation1] ss:$4 sm:$0xff] %v61
    %v263 = vld.sshfl [vmem:[#allocation1] sm:$0xff pattern:$0x73625140]
    %v264 = vld.sshfl [vmem:[#allocation1 + $0x8] sm:$0xff pattern:$0x73625140]
    %267 = vrot.lane.b32.xlu0 %v263, 113
    %v268 = vpop.permute.xlu0 %267
    %269 = vrot.lane.b32.xlu0 %v264, 113
    %v270 = vpop.permute.xlu0 %269
    %v271 = vsel %vm163, %v268, %v270
    %v272 = vsel %vm163, %v270, %v268
    %v273 = vsel %vm79, %v271, 0.0
    %v274 = vsel %vm80, %v272, 0.0
    %275 = vst [vmem:[#allocation1] ss:$4 sm:$0xff] %v61
    %v276 = vld.sshfl [vmem:[#allocation1] sm:$0xff pattern:$0x73625140]
    %v277 = vld.sshfl [vmem:[#allocation1 + $0x8] sm:$0xff pattern:$0x73625140]
    %280 = vrot.lane.b32.xlu0 %v276, 112
    %v281 = vpop.permute.xlu0 %280
    %282 = vrot.lane.b32.xlu0 %v277, 112
    %v283 = vpop.permute.xlu0 %282
    %v284 = vsel %vm177, %v281, %v283
    %v285 = vsel %vm177, %v283, %v281
    %v286 = vsel %vm77, %v284, 0.0
    %v287 = vsel %vm78, %v285, 0.0
    %288 = vst [vmem:[#allocation1] ss:$4 sm:$0xff] %v61
    %v289 = vld.sshfl [vmem:[#allocation1] sm:$0xff pattern:$0x73625140]
    %v290 = vld.sshfl [vmem:[#allocation1 + $0x8] sm:$0xff pattern:$0x73625140]
    %293 = vrot.lane.b32.xlu0 %v289, 111
    %v294 = vpop.permute.xlu0 %293
    %295 = vrot.lane.b32.xlu0 %v290, 111
    %v296 = vpop.permute.xlu0 %295
    %v297 = vsel %vm191, %v294, %v296
    %v298 = vsel %vm191, %v296, %v294
    %v299 = vsel %vm81, %v297, 0.0
    %v300 = vsel %vm82, %v298, 0.0
    %s301 = sld [smem:[#allocation2 + $0x1b]]
    %v302 = vstv %s301
    %s303 = sld [smem:[#allocation2 + $0x9]]
    %v304 = vstv %s303
    %v305 = vmul.f32 %v304, %v96
    %v306 = vmul.f32 %v304, %v97
    %v307 = vadd.f32 %v302, %v305
    %v308 = vadd.f32 %v302, %v306
    %s309 = sld [smem:[#allocation2 + $0xa]]
    %v310 = vstv %s309
    %v311 = vmul.f32 %v310, %v110
    %v312 = vmul.f32 %v310, %v111
    %v313 = vadd.f32 %v307, %v311
    %v314 = vadd.f32 %v308, %v312
    %s315 = sld [smem:[#allocation2 + $0xb]]
    %v316 = vstv %s315
    %v317 = vmul.f32 %v316, %v124
    %v318 = vmul.f32 %v316, %v125
    %v319 = vadd.f32 %v313, %v317
    %v320 = vadd.f32 %v314, %v318
    %s321 = sld [smem:[#allocation2 + $0xc]]
    %v322 = vstv %s321
    %v323 = vmul.f32 %v322, %v138
    %v324 = vmul.f32 %v322, %v139
    %v325 = vadd.f32 %v319, %v323
    %v326 = vadd.f32 %v320, %v324
    %s327 = sld [smem:[#allocation2 + $0xd]]
    %v328 = vstv %s327
    %v329 = vmul.f32 %v328, %v50
    %331 = vst [vmem:[#allocation1] ss:$4 sm:$0xff] %v329
    %v332 = vld.sshfl [vmem:[#allocation1] sm:$0xff pattern:$0x73625140]
    %v333 = vld.sshfl [vmem:[#allocation1 + $0x8] sm:$0xff pattern:$0x73625140]
    %v336 = vadd.f32 %v325, %v332
    %v337 = vadd.f32 %v326, %v333
    %s338 = sld [smem:[#allocation2 + $0xe]]
    %v339 = vstv %s338
    %v340 = vmul.f32 %v339, %v152
    %v341 = vmul.f32 %v339, %v153
    %v342 = vadd.f32 %v336, %v340
    %v343 = vadd.f32 %v337, %v341
    %s344 = sld [smem:[#allocation2 + $0xf]]
    %v345 = vstv %s344
    %v346 = vmul.f32 %v345, %v166
    %v347 = vmul.f32 %v345, %v167
    %v348 = vadd.f32 %v342, %v346
    %v349 = vadd.f32 %v343, %v347
    %s350 = sld [smem:[#allocation2 + $0x10]]
    %v351 = vstv %s350
    %v352 = vmul.f32 %v351, %v180
    %v353 = vmul.f32 %v351, %v181
    %v354 = vadd.f32 %v348, %v352
    %v355 = vadd.f32 %v349, %v353
    %s356 = sld [smem:[#allocation2 + $0x11]]
    %v357 = vstv %s356
    %v358 = vmul.f32 %v357, %v194
    %v359 = vmul.f32 %v357, %v195
    %v360 = vadd.f32 %v354, %v358
    %v361 = vadd.f32 %v355, %v359
    %s362 = sld [smem:[#allocation2 + $0x12]]
    %v363 = vstv %s362
    %v364 = vmul.f32 %v363, %v208
    %v365 = vmul.f32 %v363, %v209
    %v366 = vadd.f32 %v360, %v364
    %v367 = vadd.f32 %v361, %v365
    %s368 = sld [smem:[#allocation2 + $0x13]]
    %v369 = vstv %s368
    %v370 = vmul.f32 %v369, %v221
    %v371 = vmul.f32 %v369, %v222
    %v372 = vadd.f32 %v366, %v370
    %v373 = vadd.f32 %v367, %v371
    %s374 = sld [smem:[#allocation2 + $0x14]]
    %v375 = vstv %s374
    %v376 = vmul.f32 %v375, %v234
    %v377 = vmul.f32 %v375, %v235
    %v378 = vadd.f32 %v372, %v376
    %v379 = vadd.f32 %v373, %v377
    %s380 = sld [smem:[#allocation2 + $0x15]]
    %v381 = vstv %s380
    %v382 = vmul.f32 %v381, %v247
    %v383 = vmul.f32 %v381, %v248
    %v384 = vadd.f32 %v378, %v382
    %v385 = vadd.f32 %v379, %v383
    %s386 = sld [smem:[#allocation2 + $0x16]]
    %v387 = vstv %s386
    %v388 = vmul.f32 %v387, %v61
    %390 = vst [vmem:[#allocation1] ss:$4 sm:$0xff] %v388
    %v391 = vld.sshfl [vmem:[#allocation1] sm:$0xff pattern:$0x73625140]
    %v392 = vld.sshfl [vmem:[#allocation1 + $0x8] sm:$0xff pattern:$0x73625140]
    %v395 = vadd.f32 %v384, %v391
    %v396 = vadd.f32 %v385, %v392
    %s397 = sld [smem:[#allocation2 + $0x17]]
    %v398 = vstv %s397
    %v399 = vmul.f32 %v398, %v260
    %v400 = vmul.f32 %v398, %v261
    %v401 = vadd.f32 %v395, %v399
    %v402 = vadd.f32 %v396, %v400
    %s403 = sld [smem:[#allocation2 + $0x18]]
    %v404 = vstv %s403
    %v405 = vmul.f32 %v404, %v273
    %v406 = vmul.f32 %v404, %v274
    %v407 = vadd.f32 %v401, %v405
    %v408 = vadd.f32 %v402, %v406
    %s409 = sld [smem:[#allocation2 + $0x19]]
    %v410 = vstv %s409
    %v411 = vmul.f32 %v410, %v286
    %v412 = vmul.f32 %v410, %v287
    %v413 = vadd.f32 %v407, %v411
    %v414 = vadd.f32 %v408, %v412
    %s415 = sld [smem:[#allocation2 + $0x1a]]
    %v416 = vstv %s415
    %v417 = vmul.f32 %v416, %v299
    %v418 = vmul.f32 %v416, %v300
    %v419 = vadd.f32 %v413, %v417
    %v420 = vadd.f32 %v414, %v418
    %v423 = vrot.slane %v420, 6
    %vm424 = vcmask 1041408
    %v425 = vsel %vm424, %v419, %v423
    %v427 = vadd.f32 %v39, %v425
    %429 = vst [vmem:[#allocation1] ss:$4 sm:$0xff] %v427
    %v430 = vld.sshfl [vmem:[#allocation1] sm:$0xff pattern:$0x73625140]
    %v431 = vld.sshfl [vmem:[#allocation1 + $0x8] sm:$0xff pattern:$0x73625140]
    %434 = vrot.lane.b32.xlu0 %v430, 17
    %v435 = vpop.permute.xlu0 %434
    %436 = vrot.lane.b32.xlu0 %v431, 17
    %v437 = vpop.permute.xlu0 %436
    %v438 = vsel %vm93, %v435, %v437
    %v439 = vsel %vm93, %v437, %v435
    %v440 = vsel %vm71, %v439, 0.0
    %v441 = vsel %vm72, %v438, 0.0
    %442 = vst [vmem:[#allocation1] ss:$4 sm:$0xff] %v427
    %v443 = vld.sshfl [vmem:[#allocation1] sm:$0xff pattern:$0x73625140]
    %v444 = vld.sshfl [vmem:[#allocation1 + $0x8] sm:$0xff pattern:$0x73625140]
    %447 = vrot.lane.b32.xlu0 %v443, 16
    %v448 = vpop.permute.xlu0 %447
    %449 = vrot.lane.b32.xlu0 %v444, 16
    %v450 = vpop.permute.xlu0 %449
    %v451 = vsel %vm107, %v448, %v450
    %v452 = vsel %vm107, %v450, %v448
    %v453 = vsel %vm67, %v452, 0.0
    %v454 = vsel %vm68, %v451, 0.0
    %455 = vst [vmem:[#allocation1] ss:$4 sm:$0xff] %v427
    %v456 = vld.sshfl [vmem:[#allocation1] sm:$0xff pattern:$0x73625140]
    %v457 = vld.sshfl [vmem:[#allocation1 + $0x8] sm:$0xff pattern:$0x73625140]
    %460 = vrot.lane.b32.xlu0 %v456, 15
    %v461 = vpop.permute.xlu0 %460
    %462 = vrot.lane.b32.xlu0 %v457, 15
    %v463 = vpop.permute.xlu0 %462
    %v464 = vsel %vm121, %v461, %v463
    %v465 = vsel %vm121, %v463, %v461
    %v466 = vsel %vm75, %v465, 0.0
    %v467 = vsel %vm76, %v464, 0.0
    %468 = vst [vmem:[#allocation1] ss:$4 sm:$0xff] %v427
    %v469 = vld.sshfl [vmem:[#allocation1] sm:$0xff pattern:$0x73625140]
    %v470 = vld.sshfl [vmem:[#allocation1 + $0x8] sm:$0xff pattern:$0x73625140]
    %473 = vrot.lane.b32.xlu0 %v469, 1
    %v474 = vpop.permute.xlu0 %473
    %475 = vrot.lane.b32.xlu0 %v470, 1
    %v476 = vpop.permute.xlu0 %475
    %v477 = vsel %vm135, %v474, %v476
    %v478 = vsel %vm135, %v476, %v474
    %v479 = vsel %vm69, %v478, 0.0
    %v480 = vsel %vm70, %v477, 0.0
    %481 = vst [vmem:[#allocation1] ss:$4 sm:$0xff] %v427
    %v482 = vld.sshfl [vmem:[#allocation1] sm:$0xff pattern:$0x73625140]
    %v483 = vld.sshfl [vmem:[#allocation1 + $0x8] sm:$0xff pattern:$0x73625140]
    %486 = vrot.lane.b32.xlu0 %v482, 127
    %v487 = vpop.permute.xlu0 %486
    %488 = vrot.lane.b32.xlu0 %v483, 127
    %v489 = vpop.permute.xlu0 %488
    %v490 = vsel %vm149, %v487, %v489
    %v491 = vsel %vm149, %v489, %v487
    %v492 = vsel %vm73, %v490, 0.0
    %v493 = vsel %vm74, %v491, 0.0
    %494 = vst [vmem:[#allocation1] ss:$4 sm:$0xff] %v427
    %v495 = vld.sshfl [vmem:[#allocation1] sm:$0xff pattern:$0x73625140]
    %v496 = vld.sshfl [vmem:[#allocation1 + $0x8] sm:$0xff pattern:$0x73625140]
    %499 = vrot.lane.b32.xlu0 %v495, 113
    %v500 = vpop.permute.xlu0 %499
    %501 = vrot.lane.b32.xlu0 %v496, 113
    %v502 = vpop.permute.xlu0 %501
    %v503 = vsel %vm163, %v500, %v502
    %v504 = vsel %vm163, %v502, %v500
    %v505 = vsel %vm79, %v503, 0.0
    %v506 = vsel %vm80, %v504, 0.0
    %507 = vst [vmem:[#allocation1] ss:$4 sm:$0xff] %v427
    %v508 = vld.sshfl [vmem:[#allocation1] sm:$0xff pattern:$0x73625140]
    %v509 = vld.sshfl [vmem:[#allocation1 + $0x8] sm:$0xff pattern:$0x73625140]
    %512 = vrot.lane.b32.xlu0 %v508, 112
    %v513 = vpop.permute.xlu0 %512
    %514 = vrot.lane.b32.xlu0 %v509, 112
    %v515 = vpop.permute.xlu0 %514
    %v516 = vsel %vm177, %v513, %v515
    %v517 = vsel %vm177, %v515, %v513
    %v518 = vsel %vm77, %v516, 0.0
    %v519 = vsel %vm78, %v517, 0.0
    %520 = vst [vmem:[#allocation1] ss:$4 sm:$0xff] %v427
    %v521 = vld.sshfl [vmem:[#allocation1] sm:$0xff pattern:$0x73625140]
    %v522 = vld.sshfl [vmem:[#allocation1 + $0x8] sm:$0xff pattern:$0x73625140]
    %525 = vrot.lane.b32.xlu0 %v521, 111
    %v526 = vpop.permute.xlu0 %525
    %527 = vrot.lane.b32.xlu0 %v522, 111
    %v528 = vpop.permute.xlu0 %527
    %v529 = vsel %vm191, %v526, %v528
    %v530 = vsel %vm191, %v528, %v526
    %v531 = vsel %vm81, %v529, 0.0
    %v532 = vsel %vm82, %v530, 0.0
    %s533 = sld [smem:[#allocation2 + $0x42]]
    %v534 = vstv %s533
    %s535 = sld [smem:[#allocation2 + $0x43]]
    %v536 = vstv %s535
    %s537 = sld [smem:[#allocation2 + $0x30]]
    %v538 = vstv %s537
    %v539 = vmul.f32 %v538, %v440
    %v540 = vmul.f32 %v538, %v441
    %v541 = vadd.f32 %v534, %v539
    %v542 = vadd.f32 %v534, %v540
    %s543 = sld [smem:[#allocation2 + $0x39]]
    %v544 = vstv %s543
    %v545 = vmul.f32 %v544, %v440
    %v546 = vmul.f32 %v544, %v441
    %v547 = vadd.f32 %v536, %v545
    %v548 = vadd.f32 %v536, %v546
    %s549 = sld [smem:[#allocation2 + $0x31]]
    %v550 = vstv %s549
    %v551 = vmul.f32 %v550, %v453
    %v552 = vmul.f32 %v550, %v454
    %v553 = vadd.f32 %v541, %v551
    %v554 = vadd.f32 %v542, %v552
    %s555 = sld [smem:[#allocation2 + $0x3a]]
    %v556 = vstv %s555
    %v557 = vmul.f32 %v556, %v453
    %v558 = vmul.f32 %v556, %v454
    %v559 = vadd.f32 %v547, %v557
    %v560 = vadd.f32 %v548, %v558
    %s561 = sld [smem:[#allocation2 + $0x32]]
    %v562 = vstv %s561
    %v563 = vmul.f32 %v562, %v466
    %v564 = vmul.f32 %v562, %v467
    %v565 = vadd.f32 %v553, %v563
    %v566 = vadd.f32 %v554, %v564
    %s567 = sld [smem:[#allocation2 + $0x3b]]
    %v568 = vstv %s567
    %v569 = vmul.f32 %v568, %v466
    %v570 = vmul.f32 %v568, %v467
    %v571 = vadd.f32 %v559, %v569
    %v572 = vadd.f32 %v560, %v570
    %s573 = sld [smem:[#allocation2 + $0x33]]
    %v574 = vstv %s573
    %v575 = vmul.f32 %v574, %v479
    %v576 = vmul.f32 %v574, %v480
    %v577 = vadd.f32 %v565, %v575
    %v578 = vadd.f32 %v566, %v576
    %s579 = sld [smem:[#allocation2 + $0x3c]]
    %v580 = vstv %s579
    %v581 = vmul.f32 %v580, %v479
    %v582 = vmul.f32 %v580, %v480
    %v583 = vadd.f32 %v571, %v581
    %v584 = vadd.f32 %v572, %v582
    %s585 = sld [smem:[#allocation2 + $0x34]]
    %v586 = vstv %s585
    %v587 = vmul.f32 %v586, %v427
    %589 = vst [vmem:[#allocation1] ss:$4 sm:$0xff] %v587
    %v590 = vld.sshfl [vmem:[#allocation1] sm:$0xff pattern:$0x73625140]
    %v591 = vld.sshfl [vmem:[#allocation1 + $0x8] sm:$0xff pattern:$0x73625140]
    %v594 = vadd.f32 %v577, %v590
    %v595 = vadd.f32 %v578, %v591
    %s596 = sld [smem:[#allocation2 + $0x3d]]
    %v597 = vstv %s596
    %v598 = vmul.f32 %v597, %v427
    %600 = vst [vmem:[#allocation1] ss:$4 sm:$0xff] %v598
    %v601 = vld.sshfl [vmem:[#allocation1] sm:$0xff pattern:$0x73625140]
    %v602 = vld.sshfl [vmem:[#allocation1 + $0x8] sm:$0xff pattern:$0x73625140]
    %v605 = vadd.f32 %v583, %v601
    %v606 = vadd.f32 %v584, %v602
    %s607 = sld [smem:[#allocation2 + $0x35]]
    %v608 = vstv %s607
    %v609 = vmul.f32 %v608, %v492
    %v610 = vmul.f32 %v608, %v493
    %v611 = vadd.f32 %v594, %v609
    %v612 = vadd.f32 %v595, %v610
    %s613 = sld [smem:[#allocation2 + $0x3e]]
    %v614 = vstv %s613
    %v615 = vmul.f32 %v614, %v492
    %v616 = vmul.f32 %v614, %v493
    %v617 = vadd.f32 %v605, %v615
    %v618 = vadd.f32 %v606, %v616
    %s619 = sld [smem:[#allocation2 + $0x36]]
    %v620 = vstv %s619
    %v621 = vmul.f32 %v620, %v505
    %v622 = vmul.f32 %v620, %v506
    %v623 = vadd.f32 %v611, %v621
    %v624 = vadd.f32 %v612, %v622
    %s625 = sld [smem:[#allocation2 + $0x3f]]
    %v626 = vstv %s625
    %v627 = vmul.f32 %v626, %v505
    %v628 = vmul.f32 %v626, %v506
    %v629 = vadd.f32 %v617, %v627
    %v630 = vadd.f32 %v618, %v628
    %s631 = sld [smem:[#allocation2 + $0x37]]
    %v632 = vstv %s631
    %v633 = vmul.f32 %v632, %v518
    %v634 = vmul.f32 %v632, %v519
    %v635 = vadd.f32 %v623, %v633
    %v636 = vadd.f32 %v624, %v634
    %s637 = sld [smem:[#allocation2 + $0x40]]
    %v638 = vstv %s637
    %v639 = vmul.f32 %v638, %v518
    %v640 = vmul.f32 %v638, %v519
    %v641 = vadd.f32 %v629, %v639
    %v642 = vadd.f32 %v630, %v640
    %s643 = sld [smem:[#allocation2 + $0x38]]
    %v644 = vstv %s643
    %v645 = vmul.f32 %v644, %v531
    %v646 = vmul.f32 %v644, %v532
    %v647 = vadd.f32 %v635, %v645
    %v648 = vadd.f32 %v636, %v646
    %s649 = sld [smem:[#allocation2 + $0x41]]
    %v650 = vstv %s649
    %v651 = vmul.f32 %v650, %v531
    %v652 = vmul.f32 %v650, %v532
    %v653 = vadd.f32 %v641, %v651
    %v654 = vadd.f32 %v642, %v652
    %s655 = sld [smem:[#allocation2 + $0x2e]]
    %v656 = vstv %s655
    %s657 = sld [smem:[#allocation2 + $0x2f]]
    %v658 = vstv %s657
    %s659 = sld [smem:[#allocation2 + $0x1c]]
    %v660 = vstv %s659
    %v661 = vmul.f32 %v660, %v440
    %v662 = vmul.f32 %v660, %v441
    %v663 = vadd.f32 %v656, %v661
    %v664 = vadd.f32 %v656, %v662
    %s665 = sld [smem:[#allocation2 + $0x25]]
    %v666 = vstv %s665
    %v667 = vmul.f32 %v666, %v440
    %v668 = vmul.f32 %v666, %v441
    %v669 = vadd.f32 %v658, %v667
    %v670 = vadd.f32 %v658, %v668
    %s671 = sld [smem:[#allocation2 + $0x1d]]
    %v672 = vstv %s671
    %v673 = vmul.f32 %v672, %v453
    %v674 = vmul.f32 %v672, %v454
    %v675 = vadd.f32 %v663, %v673
    %v676 = vadd.f32 %v664, %v674
    %s677 = sld [smem:[#allocation2 + $0x26]]
    %v678 = vstv %s677
    %v679 = vmul.f32 %v678, %v453
    %v680 = vmul.f32 %v678, %v454
    %v681 = vadd.f32 %v669, %v679
    %v682 = vadd.f32 %v670, %v680
    %s683 = sld [smem:[#allocation2 + $0x1e]]
    %v684 = vstv %s683
    %v685 = vmul.f32 %v684, %v466
    %v686 = vmul.f32 %v684, %v467
    %v687 = vadd.f32 %v675, %v685
    %v688 = vadd.f32 %v676, %v686
    %s689 = sld [smem:[#allocation2 + $0x27]]
    %v690 = vstv %s689
    %v691 = vmul.f32 %v690, %v466
    %v692 = vmul.f32 %v690, %v467
    %v693 = vadd.f32 %v681, %v691
    %v694 = vadd.f32 %v682, %v692
    %s695 = sld [smem:[#allocation2 + $0x1f]]
    %v696 = vstv %s695
    %v697 = vmul.f32 %v696, %v479
    %v698 = vmul.f32 %v696, %v480
    %v699 = vadd.f32 %v687, %v697
    %v700 = vadd.f32 %v688, %v698
    %s701 = sld [smem:[#allocation2 + $0x28]]
    %v702 = vstv %s701
    %v703 = vmul.f32 %v702, %v479
    %v704 = vmul.f32 %v702, %v480
    %v705 = vadd.f32 %v693, %v703
    %v706 = vadd.f32 %v694, %v704
    %s707 = sld [smem:[#allocation2 + $0x20]]
    %v708 = vstv %s707
    %v709 = vmul.f32 %v708, %v427
    %711 = vst [vmem:[#allocation1] ss:$4 sm:$0xff] %v709
    %v712 = vld.sshfl [vmem:[#allocation1] sm:$0xff pattern:$0x73625140]
    %v713 = vld.sshfl [vmem:[#allocation1 + $0x8] sm:$0xff pattern:$0x73625140]
    %v716 = vadd.f32 %v699, %v712
    %v717 = vadd.f32 %v700, %v713
    %s718 = sld [smem:[#allocation2 + $0x29]]
    %v719 = vstv %s718
    %v720 = vmul.f32 %v719, %v427
    %722 = vst [vmem:[#allocation1] ss:$4 sm:$0xff] %v720
    %v723 = vld.sshfl [vmem:[#allocation1] sm:$0xff pattern:$0x73625140]
    %v724 = vld.sshfl [vmem:[#allocation1 + $0x8] sm:$0xff pattern:$0x73625140]
    %v727 = vadd.f32 %v705, %v723
    %v728 = vadd.f32 %v706, %v724
    %s729 = sld [smem:[#allocation2 + $0x21]]
    %v730 = vstv %s729
    %v731 = vmul.f32 %v730, %v492
    %v732 = vmul.f32 %v730, %v493
    %v733 = vadd.f32 %v716, %v731
    %v734 = vadd.f32 %v717, %v732
    %s735 = sld [smem:[#allocation2 + $0x2a]]
    %v736 = vstv %s735
    %v737 = vmul.f32 %v736, %v492
    %v738 = vmul.f32 %v736, %v493
    %v739 = vadd.f32 %v727, %v737
    %v740 = vadd.f32 %v728, %v738
    %s741 = sld [smem:[#allocation2 + $0x22]]
    %v742 = vstv %s741
    %v743 = vmul.f32 %v742, %v505
    %v744 = vmul.f32 %v742, %v506
    %v745 = vadd.f32 %v733, %v743
    %v746 = vadd.f32 %v734, %v744
    %s747 = sld [smem:[#allocation2 + $0x2b]]
    %v748 = vstv %s747
    %v749 = vmul.f32 %v748, %v505
    %v750 = vmul.f32 %v748, %v506
    %v751 = vadd.f32 %v739, %v749
    %v752 = vadd.f32 %v740, %v750
    %s753 = sld [smem:[#allocation2 + $0x23]]
    %v754 = vstv %s753
    %v755 = vmul.f32 %v754, %v518
    %v756 = vmul.f32 %v754, %v519
    %v757 = vadd.f32 %v745, %v755
    %v758 = vadd.f32 %v746, %v756
    %s759 = sld [smem:[#allocation2 + $0x2c]]
    %v760 = vstv %s759
    %v761 = vmul.f32 %v760, %v518
    %v762 = vmul.f32 %v760, %v519
    %v763 = vadd.f32 %v751, %v761
    %v764 = vadd.f32 %v752, %v762
    %s765 = sld [smem:[#allocation2 + $0x24]]
    %v766 = vstv %s765
    %v767 = vmul.f32 %v766, %v531
    %v768 = vmul.f32 %v766, %v532
    %v769 = vadd.f32 %v757, %v767
    %v770 = vadd.f32 %v758, %v768
    %s771 = sld [smem:[#allocation2 + $0x2d]]
    %v772 = vstv %s771
    %v773 = vmul.f32 %v772, %v531
    %v774 = vmul.f32 %v772, %v532
    %v775 = vadd.f32 %v763, %v773
    %v776 = vadd.f32 %v764, %v774
    %777 = vst [vmem:[%s2] sm:$0xf] %v427
    %v778 = vmul.f32 %v647, 0.5
    %v779 = vmul.f32 %v648, 0.5
    %v780 = vtanh.pop %v778
    %v781 = vtanh.pop %v779
    %v782 = vmul.f32 %v780, 0.8
    %v783 = vmul.f32 %v781, 0.8
    %v784 = vmul.f32 %v782, 1.442695
    %v785 = vpow.pop %v784
    %v786 = vmul.f32 %v783, 1.442695
    %v787 = vpow.pop %v786
    %v790 = vrot.slane %v787, 6
    %v791 = vsel %vm424, %v785, %v790
    %v793 = vmul.f32 %v50, %v791
    %v796 = vrot.slane %v770, 6
    %v797 = vsel %vm424, %v769, %v796
    %v799 = vadd.f32 %v793, %v797
    %s800 = scalar_lea.vmem %s2, 4
    %801 = vst [vmem:[%s800] sm:$0xf] %v799
    %v802 = vmul.f32 %v653, 0.5
    %v803 = vmul.f32 %v654, 0.5
    %v804 = vtanh.pop %v802
    %v805 = vtanh.pop %v803
    %v806 = vmul.f32 %v804, 0.8
    %v807 = vmul.f32 %v805, 0.8
    %v808 = vmul.f32 %v806, 1.442695
    %v809 = vpow.pop %v808
    %v810 = vmul.f32 %v807, 1.442695
    %v811 = vpow.pop %v810
    %v814 = vrot.slane %v811, 6
    %v815 = vsel %vm424, %v809, %v814
    %v817 = vmul.f32 %v61, %v815
    %v820 = vrot.slane %v776, 6
    %v821 = vsel %vm424, %v775, %v820
    %v823 = vadd.f32 %v817, %v821
    %s824 = scalar_lea.vmem %s2, 8
    %825 = vst [vmem:[%s824] sm:$0xf] %v823
    // Predicated region
    $region14: #{invblock_forward.1} parent=1 // pred_check
      _
    $region15: #{invblock_forward.1} parent=1 // pred_check_branch
      %827 = sbr.rel (0) target = $region17
    $region16: #{invblock_forward.1} parent=1 // pred_region
      _
    $region17: #{invblock_forward.1} parent=1 // pred_fallthru
      _
    // Predicated region
    $region18: #{invblock_forward.1} parent=1 // pred_check
      _
    $region19: #{invblock_forward.1} parent=1 // pred_check_branch
      %829 = sbr.rel (0) target = $region21
    $region20: #{invblock_forward.1} parent=1 // pred_region
      _
    $region21: #{invblock_forward.1} parent=1 // pred_fallthru
      _
    %830 = vsyncpa [#allocation3], 1

</llo_original>
